<compile_context>
chip_gen: v7x
topology: tpu7x:2x2x1
jax: 0.10.0
libtpu: 0.0.40
codegen_flags: <defaults>
</compile_context>

<pallas_src>
import jax
import jax.numpy as jnp
from jax import lax
from jax.experimental import pallas as pl
from jax.experimental.pallas import tpu as pltpu

EPS = 1e-5  # PyTorch BatchNorm2d default


# ------------------------------- kernel --------------------------------------
def bn_relu_kernel(x_ref, scale_ref, shift_ref, o_ref):
    # x_ref: (rt, lt)  rows = flattened (batch, channel), lanes = spatial chunk
    # scale_ref / shift_ref: (rt, 1) folded per-row BN params (broadcast on lanes)
    y = x_ref[...] * scale_ref[...] + shift_ref[...]   # VPU fma-style
    o_ref[...] = jnp.maximum(y, 0.0)                   # ReLU


# ------------------------------ tiling helpers --------------------------------
def _divisors_mult(n, m):
    """Divisors of n that are multiples of m, descending."""
    return sorted((d for d in range(m, n + 1, m) if n % d == 0), reverse=True)


def _budgets():
    """(max block bytes, scoped VMEM limit) for the current TPU generation."""
    block_cap, vmem_cap = 6 << 20, 48 << 20            # safe on v7x (64 MiB/TC)
    try:
        phys = pltpu.get_tpu_info().vmem_capacity_bytes
        if phys >= (96 << 20):                          # v5e / v6e: 128 MiB VMEM
            block_cap, vmem_cap = 8 << 20, 64 << 20
    except Exception:
        pass                                            # keep conservative caps
    return block_cap, vmem_cap


def _choose_tiles(R, L, max_block_bytes, min_steps=8):
    """Pick (rt, lt): rt % 8 == 0, lt % 128 == 0, both dividing R / L, one f32
    block under the byte cap, preferring enough grid steps to keep the
    double-buffered pipeline (and v7x megacore) busy."""
    lane_divs = _divisors_mult(L, 128)                  # descending, L first
    lt = lane_divs[-1]
    for d in lane_divs:                                 # widest lane extent that
        if 8 * d * 4 <= max_block_bytes:                # still fits an 8-row block
            lt = d
            break

    row_divs = _divisors_mult(R, 8)                     # descending
    fitting = [rt for rt in row_divs if rt * lt * 4 <= max_block_bytes]
    if not fitting:
        fitting = [row_divs[-1]]                        # 8 rows, smallest legal
    for rt in fitting:                                  # largest rt with >= min_steps
        if (R // rt) * (L // lt) >= min_steps:
            return rt, lt
    return fitting[0], lt                               # small input: one big tile


# ------------------------------- wrapper --------------------------------------
def align_module_forward(x, gamma, beta, running_mean, running_var):
    """x: (B, C, H, W) float32; per-channel BN params of shape (C,)."""
    B, C, H, W = x.shape
    R, L = B * C, H * W
    x2 = x.reshape(R, L).astype(jnp.float32)            # free reshape, no transpose

    # Fold BN params once (O(C) XLA work): y = x*scale + shift.
    inv_std = lax.rsqrt(running_var.astype(jnp.float32) + EPS)
    scale_c = gamma.astype(jnp.float32) * inv_std
    shift_c = beta.astype(jnp.float32) - running_mean.astype(jnp.float32) * scale_c
    scale = jnp.tile(scale_c, B).reshape(R, 1)           # row r = b*C + c -> param[c]
    shift = jnp.tile(shift_c, B).reshape(R, 1)

    # Pad to lane-dense last dim (%128) and sublane-aligned rows (%8).
    Lp = ((L + 127) // 128) * 128
    Rp = ((R + 7) // 8) * 8
    if Lp != L:
        x2 = jnp.pad(x2, ((0, 0), (0, Lp - L)))
    if Rp != R:
        x2 = jnp.pad(x2, ((0, Rp - R), (0, 0)))
        scale = jnp.pad(scale, ((0, Rp - R), (0, 0)))
        shift = jnp.pad(shift, ((0, Rp - R), (0, 0)))

    block_cap, vmem_cap = _budgets()
    rt, lt = _choose_tiles(Rp, Lp, block_cap)
    grid = (Rp // rt, Lp // lt)

    # Scoped-VMEM budget: double-buffered x/out blocks + 2 lane-padded param
    # blocks + headroom, clamped to the generation's safe cap.
    block_bytes = rt * lt * 4
    param_bytes = max(rt, 8) * 128 * 4
    vmem_bytes = 2 * (2 * block_bytes + 2 * param_bytes) + (2 << 20)
    vmem_bytes = max(min(vmem_bytes, vmem_cap), 16 << 20)

    grid_spec = pltpu.PrefetchScalarGridSpec(
        num_scalar_prefetch=0,
        grid=grid,
        in_specs=[
            pl.BlockSpec((rt, lt), lambda i, j: (i, j)),   # x  (lane-dense)
            pl.BlockSpec((rt, 1), lambda i, j: (i, 0)),    # folded scale
            pl.BlockSpec((rt, 1), lambda i, j: (i, 0)),    # folded shift
        ],
        out_specs=pl.BlockSpec((rt, lt), lambda i, j: (i, j)),
    )

    cost = pl.CostEstimate(
        flops=3 * Rp * Lp,                                 # mul + add + max
        transcendentals=0,
        bytes_accessed=2 * Rp * Lp * 4 + 4 * Rp * 4,       # x in + out + params
    )

    out2 = pl.pallas_call(
        bn_relu_kernel,
        out_shape=jax.ShapeDtypeStruct((Rp, Lp), jnp.float32),
        grid_spec=grid_spec,
        compiler_params=pltpu.CompilerParams(
            dimension_semantics=("parallel", "parallel"),  # all tiles independent
            vmem_limit_bytes=vmem_bytes,
        ),
        cost_estimate=cost,
    )(x2, scale, shift)

    return out2[:R, :L].reshape(B, C, H, W)


# --------------------------- pure-JAX reference -------------------------------
def align_reference(x, gamma, beta, mean, var):
    scale = gamma / jnp.sqrt(var + EPS)
    shift = beta - mean * scale
    y = x * scale[None, :, None, None] + shift[None, :, None, None]
    return jnp.maximum(y, 0.0)


# ----------------------------------- main --------------------------------------
if __name__ == "__main__":
    B, C, H, W = 2, 4, 16, 16
    key = jax.random.PRNGKey(0)
    kx, kg, kb, km, kv = jax.random.split(key, 5)

    x = jax.random.normal(kx, (B, C, H, W), dtype=jnp.float32)
    gamma = (1.0 + 0.1 * jax.random.normal(kg, (C,))).astype(jnp.float32)
    beta = (0.1 * jax.random.normal(kb, (C,))).astype(jnp.float32)
    running_mean = (0.2 * jax.random.normal(km, (C,))).astype(jnp.float32)
    running_var = (jnp.abs(jax.random.normal(kv, (C,))) + 0.5).astype(jnp.float32)

    out = align_module_forward(x, gamma, beta, running_mean, running_var)
    out = jax.block_until_ready(out)

    ref = align_reference(x, gamma, beta, running_mean, running_var)
    if not jnp.allclose(out, ref, rtol=1e-4, atol=1e-4):
        raise SystemExit(
            f"mismatch: max abs err {float(jnp.max(jnp.abs(out - ref)))}")
    print("KERNEL_OK")
</pallas_src>

<mosaic_0001>
module attributes {stable_mosaic.version = 11 : i64} {
  func.func @bn_relu_kernel(%arg0: i32, %arg1: i32, %arg2: memref<8x256xf32, #tpu.memory_space<vmem>>, %arg3: memref<8x1xf32, #tpu.memory_space<vmem>>, %arg4: memref<8x1xf32, #tpu.memory_space<vmem>>, %arg5: memref<8x256xf32, #tpu.memory_space<vmem>>) attributes {dimension_semantics = [#tpu.dimension_semantics<parallel>, #tpu.dimension_semantics<parallel>], iteration_bounds = array<i64: 1, 1>, scalar_prefetch = 0 : i64, scratch_operands = 0 : i64, tpu.core_type = #tpu.core_type<tc>, window_params = [{transform_indices = @transform_0, window_bounds = array<i64: 8, 256>}, {transform_indices = @transform_1, window_bounds = array<i64: 8, 1>}, {transform_indices = @transform_2, window_bounds = array<i64: 8, 1>}, {transform_indices = @transform_3, window_bounds = array<i64: 8, 256>}]} {
    %c0 = arith.constant 0 : index
    %c0_0 = arith.constant 0 : index
    %0 = vector.load %arg2[%c0, %c0_0] : memref<8x256xf32, #tpu.memory_space<vmem>>, vector<8x256xf32>
    %c0_1 = arith.constant 0 : index
    %c0_2 = arith.constant 0 : index
    %1 = vector.load %arg3[%c0_1, %c0_2] : memref<8x1xf32, #tpu.memory_space<vmem>>, vector<8x1xf32>
    %2 = vector.broadcast %1 : vector<8x1xf32> to vector<8x256xf32>
    %3 = arith.mulf %0, %2 : vector<8x256xf32>
    %c0_3 = arith.constant 0 : index
    %c0_4 = arith.constant 0 : index
    %4 = vector.load %arg4[%c0_3, %c0_4] : memref<8x1xf32, #tpu.memory_space<vmem>>, vector<8x1xf32>
    %5 = vector.broadcast %4 : vector<8x1xf32> to vector<8x256xf32>
    %6 = arith.addf %3, %5 : vector<8x256xf32>
    %cst = arith.constant 0.000000e+00 : f32
    %7 = vector.broadcast %cst : f32 to vector<8x256xf32>
    %8 = arith.maximumf %6, %7 : vector<8x256xf32>
    %c0_5 = arith.constant 0 : index
    %c0_6 = arith.constant 0 : index
    %9 = vector.load %arg5[%c0_5, %c0_6] : memref<8x256xf32, #tpu.memory_space<vmem>>, vector<8x256xf32>
    tpu.vector_store %arg5[%c0_5, %c0_6], %8 {strides = array<i32>} : memref<8x256xf32, #tpu.memory_space<vmem>>, vector<8x256xf32>,
    return
  }
  func.func @transform_0(%arg0: i32, %arg1: i32) -> (i32, i32) {
    %c0_i32 = arith.constant 0 : i32
    return %arg0, %arg1 : i32, i32
  }
  func.func @transform_1(%arg0: i32, %arg1: i32) -> (i32, i32) {
    %c0_i32 = arith.constant 0 : i32
    %c0_i32_0 = arith.constant 0 : i32
    return %arg0, %c0_i32 : i32, i32
  }
  func.func @transform_2(%arg0: i32, %arg1: i32) -> (i32, i32) {
    %c0_i32 = arith.constant 0 : i32
    %c0_i32_0 = arith.constant 0 : i32
    return %arg0, %c0_i32 : i32, i32
  }
  func.func @transform_3(%arg0: i32, %arg1: i32) -> (i32, i32) {
    %c0_i32 = arith.constant 0 : i32
    return %arg0, %arg1 : i32, i32
  }
}

</mosaic_0001>

<llo_original>
// kernel: tpu_custom_call.1
$region0: #{tpu_custom_call.1}
  #allocation0 [shape = 'u32[]', space=smem, size = 0x4, offset = 0x4, fixed_abs, tag = 'smem constant byte address 0x4 - core index']
  #allocation1 [shape = 'u32[144,128]{1,0:T(1,128)}', space=vmem, size = 0x12000, scoped, tag = 'internal scratch']
  %s0 = inlined_call_operand.vmem [shape: f32[8,256], index: 0, kind: input, shape index: {}]
  %s1 = inlined_call_operand.vmem [shape: f32[8,1], index: 1, kind: input, shape index: {}]
  %s2 = inlined_call_operand.vmem [shape: f32[8,1], index: 2, kind: input, shape index: {}]
  %s3 = inlined_call_operand.hbm [shape: f32[8,256], index: 3, kind: output, shape index: {}]
  %s4 = sld [smem:[#allocation0]]
  $region22: #{tpu_custom_call.1} parent=0
    _
  %s6 = ssub.s32 1, %s4
  %s7 = scalar_select 0, %s6, %s4
  $region1: #{tpu_custom_call.1} parent=0
    #allocation2 [shape = 'u8[8192]{0}', space=vmem, size = 0x2000, scoped, tag = 'output window, operand 0, single buffered']
    #allocation3 [shape = 's32[1]{0}', space=sflag, size = 0x4, scoped, tag = 'scoped memory for tpu_custom_call.1']
    %8 = vsyncpa [#allocation3], 0
    // Predicated region
    $region2: #{tpu_custom_call.1} parent=1 // pred_check
      _
    $region3: #{tpu_custom_call.1} parent=1 // pred_check_branch
      %10 = sbr.rel (0) target = $region5
    $region4: #{tpu_custom_call.1} parent=1 // pred_region
      _
    $region5: #{tpu_custom_call.1} parent=1 // pred_fallthru
      _
    // Predicated region
    $region6: #{tpu_custom_call.1} parent=1 // pred_check
      _
    $region7: #{tpu_custom_call.1} parent=1 // pred_check_branch
      %12 = sbr.rel (0) target = $region9
    $region8: #{tpu_custom_call.1} parent=1 // pred_region
      _
    $region9: #{tpu_custom_call.1} parent=1 // pred_fallthru
      _
    // Predicated region
    $region10: #{tpu_custom_call.1} parent=1 // pred_check
      _
    $region11: #{tpu_custom_call.1} parent=1 // pred_check_branch
      %14 = sbr.rel (0) target = $region13
    $region12: #{tpu_custom_call.1} parent=1 // pred_region
      _
    $region13: #{tpu_custom_call.1} parent=1 // pred_fallthru
      _
    %v15 = vld [vmem:[%s0] sm:$0xff]
    %v16 = vld [vmem:[%s0 + $0x8] sm:$0xff]
    %v17 = vld [vmem:[%s1] sm:$0xff]
    %19 = vset.pattern.permute.xlu0 0
    %20 = vperm.xlu0 %19, %v17
    %v21 = vpop.permute.xlu0 %20
    %v23 = vmul.f32 %v15, %v21
    %v24 = vmul.f32 %v16, %v21
    %v25 = vld [vmem:[%s2] sm:$0xff]
    %27 = vset.pattern.permute.xlu0 0
    %28 = vperm.xlu0 %27, %v25
    %v29 = vpop.permute.xlu0 %28
    %v31 = vadd.f32 %v23, %v29
    %v32 = vadd.f32 %v24, %v29
    %v33 = vmax.f32 %v31, 0.0
    %v34 = vmax.f32 %v32, 0.0
    %35 = vst [vmem:[#allocation2] sm:$0xff] %v33
    %36 = vst [vmem:[#allocation2 + $0x8] sm:$0xff] %v34
    // Predicated region
    $region14: #{tpu_custom_call.1} parent=1 // pred_check
      _
    $region15: #{tpu_custom_call.1} parent=1 // pred_check_branch
      %38 = sbr.rel (0) target = $region17
    $region16: #{tpu_custom_call.1} parent=1 // pred_region
      %s40 = ssub.s32 256, 256
      %41 = vsyncadd [#allocation3], %s40
      %s43 = sshll.u32 [#allocation2], 4
      %s44 = int_to_ptr.vmem [resolvable:$true] %s43
      %46 = dma.vmem_to_hbm [thread:$0]  %s44, 256, %s3, [#allocation3]
    $region17: #{tpu_custom_call.1} parent=1 // pred_fallthru
      _
    // Predicated region
    $region18: #{tpu_custom_call.1} parent=1 // pred_check
      _
    $region19: #{tpu_custom_call.1} parent=1 // pred_check_branch
      %48 = sbr.rel (0) target = $region21
    $region20: #{tpu_custom_call.1} parent=1 // pred_region
      %49 = dma.done [#allocation3], 256
    $region21: #{tpu_custom_call.1} parent=1 // pred_fallthru
      _
    %50 = vsyncpa [#allocation3], 1

</llo_original>
